<compile_context>
chip_gen: v7x
topology: tpu7x:2x2x1
jax: 0.10.0
libtpu: 0.0.40
codegen_flags: <defaults>
</compile_context>

<pallas_src>
import jax
import jax.numpy as jnp
import numpy as np
from jax import lax
from jax.experimental import pallas as pl
from jax.experimental.pallas import tpu as pltpu


def _round_up(x, m):
    return ((x + m - 1) // m) * m


def _dwtc_matmul_kernel(w_ref, x_ref, o_ref):
    # w_ref: (TCout, KKCin)    folded pointwise*flipped-depthwise weights (Cout block)
    # x_ref: (1, KKCin, TM)    im2col'd input strip, spatial positions on lanes
    # o_ref: (1, TCout, TM)    output strip (NCHW-flat), spatial positions on lanes
    o_ref[0] = jnp.dot(w_ref[...], x_ref[0],
                       preferred_element_type=jnp.float32).astype(o_ref.dtype)


def depthwise_transposed_conv(x_nchw, w_pwc, w_dwc, *, stride=1, padding=0,
                              tile_positions=256):
    """Forward of DepthWiseTransposedConv.

    x_nchw: (N, Cin, H, W)
    w_pwc : (Cout, Cin, 1, 1)   nn.Conv2d(in, out, 1, bias=False).weight
    w_dwc : (Cout, 1, K, K)     nn.ConvTranspose2d(out, out, K, groups=out).weight
    returns (N, Cout, Ho, Wo) with Ho = (H-1)*stride - 2*padding + K
    """
    assert stride == 1, "only stride=1 implemented"
    N, Cin, H, W = x_nchw.shape
    Cout = w_pwc.shape[0]
    K = w_dwc.shape[2]
    pad = K - 1 - padding
    assert pad >= 0, "padding must be <= kernel_size - 1"
    Ho = H + K - 1 - 2 * padding
    Wo = W + K - 1 - 2 * padding
    dt = x_nchw.dtype
    dt_size = jnp.dtype(dt).itemsize

    # --- wrapper glue (plain JAX) --------------------------------------------
    # Fold depthwise (flipped) taps into the pointwise weight, stacked along the
    # contraction axis:  w2[co, t*Cin + ci] = pwc[co, ci] * flip(dwc)[co, t].
    # Fold is done in f32, cast once to the compute dtype (f32 here).
    w_pw = w_pwc[:, :, 0, 0].astype(jnp.float32)                        # (Cout, Cin)
    w_dw = jnp.flip(w_dwc[:, 0], axis=(-2, -1)).reshape(
        Cout, K * K).astype(jnp.float32)                                # (Cout, K*K)
    w2 = (w_dw[:, :, None] * w_pw[:, None, :]).reshape(
        Cout, K * K * Cin).astype(dt)                                   # (Cout, K*K*Cin)

    # Spatial zero-pad (transposed conv == plain conv with flipped kernel and
    # padding K-1-p), then im2col with taps stacked on the contraction axis.
    # Input stays NCHW end-to-end; no NHWC transposes.
    x_pad = jnp.pad(x_nchw, ((0, 0), (0, 0), (pad, pad), (pad, pad)))
    L = Ho * Wo
    taps = [x_pad[:, :, kh:kh + Ho, kw:kw + Wo].reshape(N, Cin, L)
            for kh in range(K) for kw in range(K)]
    x_cols = jnp.stack(taps, axis=1).reshape(N, K * K * Cin, L)         # (N, K*K*Cin, L)

    # Fixed flat strip length TM (multiple of 128 -> lane-dense loads/stores;
    # per-strip working set independent of image width).
    TM = min(tile_positions, _round_up(L, 128))
    TM = _round_up(TM, 128)
    L_pad = _round_up(L, TM)
    n_strips = L_pad // TM

    # Pad contraction dim to a sublane multiple and the position dim to L_pad
    # in a single pad call (zeros do not change the matmul result).
    KKCin = _round_up(K * K * Cin, 8)
    x_cols = jnp.pad(x_cols, ((0, 0), (0, KKCin - K * K * Cin), (0, L_pad - L)))
    w2 = jnp.pad(w2, ((0, 0), (0, KKCin - K * K * Cin)))

    # Cout blocking (sublane axis of the output) for production channel counts.
    if Cout >= 256 and Cout % 256 == 0:
        TCout = 256
    elif Cout >= 128 and Cout % 128 == 0:
        TCout = 128
    else:
        TCout = Cout
    n_cb = Cout // TCout

    # VMEM budget from actual per-strip blocks (double-buffered) + headroom;
    # comfortably inside v7x's 64 MiB even for large Cout / TM.
    block_bytes = (TCout * KKCin + KKCin * TM + TCout * TM) * dt_size
    vmem_limit = int(min(100 * 1024 * 1024,
                         max(4 * 1024 * 1024, 4 * block_bytes + (1 << 20))))

    out_flat = pl.pallas_call(
        _dwtc_matmul_kernel,
        out_shape=jax.ShapeDtypeStruct((N, Cout, L_pad), dt),
        grid=(N, n_cb, n_strips),
        in_specs=[
            pl.BlockSpec((TCout, KKCin), lambda n, cb, s: (cb, 0)),
            pl.BlockSpec((1, KKCin, TM), lambda n, cb, s: (n, 0, s)),
        ],
        out_specs=pl.BlockSpec((1, TCout, TM), lambda n, cb, s: (n, cb, s)),
        compiler_params=pltpu.CompilerParams(
            dimension_semantics=("parallel", "parallel", "parallel"),
            vmem_limit_bytes=vmem_limit),
    )(w2, x_cols)

    # Crop the position padding and restore spatial dims (already NCHW).
    return out_flat[:, :, :L].reshape(N, Cout, Ho, Wo)


def _reference(x_nchw, w_pwc, w_dwc, *, stride=1, padding=0):
    """Pure-JAX reference matching PyTorch semantics."""
    Cout = w_pwc.shape[0]
    K = w_dwc.shape[2]
    y = jnp.einsum('nchw,oc->nohw', x_nchw, w_pwc[:, :, 0, 0])
    return lax.conv_general_dilated(
        y, jnp.flip(w_dwc, axis=(-2, -1)),
        window_strides=(1, 1),
        padding=[(K - 1 - padding, K - 1 - padding)] * 2,
        lhs_dilation=(stride, stride),
        dimension_numbers=('NCHW', 'OIHW', 'NCHW'),
        feature_group_count=Cout)


if __name__ == "__main__":
    # Small shapes consistent with the module.
    N, Cin, Cout, H, W, K = 2, 4, 8, 16, 16, 3
    stride, padding = 1, 0  # module defaults

    key = jax.random.PRNGKey(0)
    k_pwc, k_dwc, k_x = jax.random.split(key, 3)

    # Deterministic kaiming_normal_(mode='fan_in', nonlinearity='linear'):
    #   pwc weight (Cout, Cin, 1, 1): fan_in = Cin * 1 * 1
    #   dwc weight (Cout, 1, K, K)  : fan_in = 1 * K * K
    w_pwc = (1.0 / jnp.sqrt(Cin)) * jax.random.normal(
        k_pwc, (Cout, Cin, 1, 1), jnp.float32)
    w_dwc = (1.0 / jnp.sqrt(K * K)) * jax.random.normal(
        k_dwc, (Cout, 1, K, K), jnp.float32)
    x = jax.random.normal(k_x, (N, Cin, H, W), jnp.float32)

    out = depthwise_transposed_conv(x, w_pwc, w_dwc, stride=stride, padding=padding)
    out = jax.block_until_ready(out)

    ref = jax.block_until_ready(
        _reference(x, w_pwc, w_dwc, stride=stride, padding=padding))

    assert out.shape == (N, Cout, (H - 1) * stride - 2 * padding + K,
                         (W - 1) * stride - 2 * padding + K), out.shape
    np.testing.assert_allclose(np.asarray(out), np.asarray(ref),
                               rtol=1e-5, atol=1e-5)
    print("KERNEL_OK")
</pallas_src>

<mosaic_0001>
module attributes {stable_mosaic.version = 11 : i64} {
  func.func @_dwtc_matmul_kernel(%arg0: i32, %arg1: i32, %arg2: i32, %arg3: memref<8x40xf32, #tpu.memory_space<vmem>>, %arg4: memref<1x40x256xf32, #tpu.memory_space<vmem>>, %arg5: memref<1x8x256xf32, #tpu.memory_space<vmem>>) attributes {dimension_semantics = [#tpu.dimension_semantics<parallel>, #tpu.dimension_semantics<parallel>, #tpu.dimension_semantics<parallel>], iteration_bounds = array<i64: 2, 1, 2>, scalar_prefetch = 0 : i64, scratch_operands = 0 : i64, tpu.core_type = #tpu.core_type<tc>, window_params = [{transform_indices = @transform_0, window_bounds = array<i64: 8, 40>}, {transform_indices = @transform_1, window_bounds = array<i64: 1, 40, 256>}, {transform_indices = @transform_2, window_bounds = array<i64: 1, 8, 256>}]} {
    %c0 = arith.constant 0 : index
    %c0_0 = arith.constant 0 : index
    %0 = vector.load %arg3[%c0, %c0_0] : memref<8x40xf32, #tpu.memory_space<vmem>>, vector<8x40xf32>
    %c0_1 = arith.constant 0 : index
    %c0_2 = arith.constant 0 : index
    %c0_3 = arith.constant 0 : index
    %1 = vector.load %arg4[%c0_1, %c0_2, %c0_3] : memref<1x40x256xf32, #tpu.memory_space<vmem>>, vector<1x40x256xf32>
    %2 = vector.shape_cast %1 : vector<1x40x256xf32> to vector<40x256xf32>
    %cst = arith.constant dense<0.000000e+00> : vector<8x256xf32>
    %3 = tpu.matmul %0, %2, %cst {dimension_numbers = #tpu.dot_dimension_numbers<[1], [0], [0], [1], [0, 0, 1, 1], [], []>} : vector<8x40xf32>, vector<40x256xf32>, vector<8x256xf32> -> vector<8x256xf32>
    %c0_4 = arith.constant 0 : index
    %c0_5 = arith.constant 0 : index
    %c0_6 = arith.constant 0 : index
    %4 = vector.load %arg5[%c0_4, %c0_5, %c0_6] : memref<1x8x256xf32, #tpu.memory_space<vmem>>, vector<1x8x256xf32>
    %5 = vector.shape_cast %4 : vector<1x8x256xf32> to vector<8x256xf32>
    %6 = vector.shape_cast %3 : vector<8x256xf32> to vector<1x8x256xf32>
    tpu.vector_store %arg5[%c0_4, %c0_5, %c0_6], %6 {strides = array<i32>} : memref<1x8x256xf32, #tpu.memory_space<vmem>>, vector<1x8x256xf32>,
    return
  }
  func.func @transform_0(%arg0: i32, %arg1: i32, %arg2: i32) -> (i32, i32) {
    %c0_i32 = arith.constant 0 : i32
    %c0_i32_0 = arith.constant 0 : i32
    return %arg1, %c0_i32 : i32, i32
  }
  func.func @transform_1(%arg0: i32, %arg1: i32, %arg2: i32) -> (i32, i32, i32) {
    %c0_i32 = arith.constant 0 : i32
    %c0_i32_0 = arith.constant 0 : i32
    return %arg0, %c0_i32, %arg2 : i32, i32, i32
  }
  func.func @transform_2(%arg0: i32, %arg1: i32, %arg2: i32) -> (i32, i32, i32) {
    %c0_i32 = arith.constant 0 : i32
    return %arg0, %arg1, %arg2 : i32, i32, i32
  }
}

</mosaic_0001>

<llo_original>
// kernel: tpu_custom_call.1
$region0: #{tpu_custom_call.1}
  #allocation0 [shape = 'u32[]', space=smem, size = 0x4, offset = 0x4, fixed_abs, tag = 'smem constant byte address 0x4 - core index']
  #allocation1 [shape = 'u32[144,128]{1,0:T(1,128)}', space=vmem, size = 0x12000, scoped, tag = 'internal scratch']
  %s0 = inlined_call_operand.hbm [shape: f32[8,40], index: 0, kind: input, shape index: {}]
  %s1 = inlined_call_operand.hbm [shape: f32[2,40,512], index: 1, kind: input, shape index: {}]
  %s2 = inlined_call_operand.hbm [shape: f32[2,8,512], index: 2, kind: output, shape index: {}]
  %s3 = sld [smem:[#allocation0]]
  $region49: #{tpu_custom_call.1} parent=0
    _
  %s5 = ssub.s32 1, %s3
  %s6 = scalar_select 0, %s5, %s3
  $region1: #{tpu_custom_call.1} parent=0
    #allocation2 [shape = 'u8[4096]{0}', space=vmem, size = 0x1000, scoped, tag = 'input window, operand 0, single buffered']
    #allocation3 [shape = 's32[2]{0}', space=sflag, size = 0x8, scoped, tag = 'scoped memory for tpu_custom_call.1']
    #allocation4 [shape = 's32[2]{0}', space=sflag, size = 0x8, scoped, tag = 'scoped memory for tpu_custom_call.1']
    #allocation5 [shape = 'u8[81920]{0}', space=vmem, size = 0x14000, scoped, tag = 'input window, operand 1']
    #allocation6 [shape = 's32[2]{0}', space=sflag, size = 0x8, scoped, tag = 'scoped memory for tpu_custom_call.1']
    #allocation7 [shape = 'u8[16384]{0}', space=vmem, size = 0x4000, scoped, tag = 'output window, operand 0']
    %7 = vsyncpa [#allocation3], 0
    %8 = vsyncpa [#allocation6], 0
    %s9 = scalar_lea.sflag [#allocation6], 1
    %10 = vsyncpa %s9, 0
    %11 = vsyncpa [#allocation4], 0
    %s12 = scalar_lea.sflag [#allocation4], 1
    %13 = vsyncpa %s12, 0
    loop: start=0, step=1, limit=6
    $region2: #{tpu_custom_call.1} parent=1 // loop_pre_header
      _
    $region3: #{tpu_custom_call.1} parent=1 // loop_header
      %s15 = sphi 0, %s19
      %p16 = scmp.ge.s32.totalorder %s15, 6
      %s22 = sphi 0, %s41
      %s23 = sphi 0, %s37
      %s24 = sphi 0, %s33
      %s25 = sphi 0, %s22
      %s26 = sphi 0, %s23
      %s27 = sphi 0, %s24
      %s28 = sphi 0, %s25
      %s29 = sphi 0, %s26
      %s30 = sphi 0, %s27
      %s44 = sphi 0, %s46
      %s47 = sphi 0, %s44
      %s48 = sphi 0, %s47
      %s64 = sphi 0, %s48
      %s72 = sphi 0, %s74
      %s75 = sphi 0, %s72
      %s76 = sphi 0, %s75
      %s92 = sphi 0, %s76
      %s102 = sphi 0, %s104
      %s105 = sphi 0, %s102
      %s106 = sphi 0, %s105
      %s122 = sphi 0, %s106
    $region4: #{tpu_custom_call.1} parent=1 // loop_header_branch
      %18 = sbr.rel (%p16) target = $region8
    $region5: #{tpu_custom_call.1} parent=1 // loop_body
      %s20 = ssub.s32 %s15, 1
      %s21 = ssub.s32 %s15, 2
      %s31 = sadd.s32 1, %s24
      %p32 = scmp.ge.s32.totalorder %s31, 2
      %s33 = scalar_select %p32, 0, %s31
      %s34 = sadd.s32 1, %s23
      %s35 = scalar_select %p32, %s34, %s23
      %p36 = scmp.ge.s32.totalorder %s35, 1
      %s37 = scalar_select %p36, 0, %s35
      %s38 = sadd.s32 1, %s22
      %s39 = scalar_select %p36, %s38, %s22
      %p40 = scmp.ge.s32.totalorder %s39, 2
      %s41 = scalar_select %p40, 0, %s39
      %s42 = ssub.s32 %s23, %s37
      %p43 = scmp.eq.s32.totalorder %s42, 0
      %s45 = sadd.s32 %s44, 1
      %s46 = scalar_select %p43, %s44, %s45
      %p49 = pneg %p43
      %p50 = scmp.eq.s32.totalorder %s15, 3
      %p51 = por %p49, %p50
      %p52 = scmp.ne.s32.totalorder %s44, %s47
      %p53 = scmp.eq.s32.totalorder %s15, 0
      %p54 = por %p52, %p53
      %p55 = scmp.ne.s32.totalorder %s44, %s47
      %p56 = scmp.eq.s32.totalorder %s20, 3
      %p57 = por %p55, %p56
      %p58 = scmp.ne.s32.totalorder %s47, %s48
      %p59 = scmp.eq.s32.totalorder %s20, 0
      %p60 = por %p58, %p59
      %p61 = scmp.ne.s32.totalorder %s47, %s48
      %p62 = scmp.eq.s32.totalorder %s21, 3
      %p63 = por %p61, %p62
      %p65 = scmp.ne.s32.totalorder %s48, %s64
      %p66 = scmp.eq.s32.totalorder %s21, 0
      %p67 = por %p65, %p66
      %s68 = ssub.s32 %s22, %s41
      %s69 = ssub.s32 %s24, %s33
      %s70 = sor.u32 %s68, %s69
      %p71 = scmp.eq.s32.totalorder %s70, 0
      %s73 = sadd.s32 %s72, 1
      %s74 = scalar_select %p71, %s72, %s73
      %p77 = pneg %p71
      %p78 = scmp.eq.s32.totalorder %s15, 3
      %p79 = por %p77, %p78
      %p80 = scmp.ne.s32.totalorder %s72, %s75
      %p81 = scmp.eq.s32.totalorder %s15, 0
      %p82 = por %p80, %p81
      %p83 = scmp.ne.s32.totalorder %s72, %s75
      %p84 = scmp.eq.s32.totalorder %s20, 3
      %p85 = por %p83, %p84
      %p86 = scmp.ne.s32.totalorder %s75, %s76
      %p87 = scmp.eq.s32.totalorder %s20, 0
      %p88 = por %p86, %p87
      %p89 = scmp.ne.s32.totalorder %s75, %s76
      %p90 = scmp.eq.s32.totalorder %s21, 3
      %p91 = por %p89, %p90
      %p93 = scmp.ne.s32.totalorder %s76, %s92
      %p94 = scmp.eq.s32.totalorder %s21, 0
      %p95 = por %p93, %p94
      %s96 = ssub.s32 %s22, %s41
      %s97 = ssub.s32 %s23, %s37
      %s98 = sor.u32 %s96, %s97
      %s99 = ssub.s32 %s24, %s33
      %s100 = sor.u32 %s98, %s99
      %p101 = scmp.eq.s32.totalorder %s100, 0
      %s103 = sadd.s32 %s102, 1
      %s104 = scalar_select %p101, %s102, %s103
      %p107 = pneg %p101
      %p108 = scmp.eq.s32.totalorder %s15, 3
      %p109 = por %p107, %p108
      %p110 = scmp.ne.s32.totalorder %s102, %s105
      %p111 = scmp.eq.s32.totalorder %s15, 0
      %p112 = por %p110, %p111
      %p113 = scmp.ne.s32.totalorder %s102, %s105
      %p114 = scmp.eq.s32.totalorder %s20, 3
      %p115 = por %p113, %p114
      %p116 = scmp.ne.s32.totalorder %s105, %s106
      %p117 = scmp.eq.s32.totalorder %s20, 0
      %p118 = por %p116, %p117
      %p119 = scmp.ne.s32.totalorder %s105, %s106
      %p120 = scmp.eq.s32.totalorder %s21, 3
      %p121 = por %p119, %p120
      %p123 = scmp.ne.s32.totalorder %s106, %s122
      %p124 = scmp.eq.s32.totalorder %s21, 0
      %p125 = por %p123, %p124
      %p126 = scmp.le.s32.totalorder 1, %s15
      %p127 = scmp.lt.s32.totalorder %s15, 5
      %p128 = pnand %p126, %p127
      %p129 = pneg %p128
      // Predicated region
      $region9: #{tpu_custom_call.1} parent=5 // pred_check
        _
      $region10: #{tpu_custom_call.1} parent=5 // pred_check_branch
        %131 = sbr.rel (%p128) target = $region12
      $region11: #{tpu_custom_call.1} parent=5 // pred_region
        %s132 = ssub.s32 %s15, 1
        // Predicated region
        $region13: #{tpu_custom_call.1} parent=11 // pred_check
          %p133 = pneg %p60
        $region14: #{tpu_custom_call.1} parent=11 // pred_check_branch
          %135 = sbr.rel (%p133) target = $region16
        $region15: #{tpu_custom_call.1} parent=11 // pred_region
          %s137 = ssub.s32 128, 128
          %138 = vsyncadd [#allocation3], %s137
          %s139 = smul.addr %s26, 128
          %s140 = scalar_lea.hbm %s0, %s139
          %s142 = sshll.u32 [#allocation2], 4
          %s143 = int_to_ptr.vmem [resolvable:$true] %s142
          %145 = dma.hbm_to_vmem [thread:$0]  %s140, 128, %s143, [#allocation3]
        $region16: #{tpu_custom_call.1} parent=11 // pred_fallthru
          _
      $region12: #{tpu_custom_call.1} parent=5 // pred_fallthru
        _
      %p146 = scmp.lt.s32.totalorder %s15, 4
      // Predicated region
      $region17: #{tpu_custom_call.1} parent=5 // pred_check
        %p147 = pneg %p146
      $region18: #{tpu_custom_call.1} parent=5 // pred_check_branch
        %149 = sbr.rel (%p147) target = $region20
      $region19: #{tpu_custom_call.1} parent=5 // pred_region
        // Predicated region
        $region21: #{tpu_custom_call.1} parent=19 // pred_check
          %p150 = pneg %p82
        $region22: #{tpu_custom_call.1} parent=19 // pred_check_branch
          %152 = sbr.rel (%p150) target = $region24
        $region23: #{tpu_custom_call.1} parent=19 // pred_region
          %s153 = sand.u32 %s72, 1
          %s154 = scalar_lea.sflag [#allocation6], %s153
          %s155 = sand.u32 %s72, 1
          %s156 = smul.addr %s155, 80
          %s157 = scalar_lea.vmem [#allocation5], %s156
          %s158 = smul.u32 2, %s24
          %s160 = ssub.s32 1280, 1280
          %161 = vsyncadd %s154, %s160
          %s162 = smul.addr %s22, 20
          %s163 = sadd.s32 %s158, %s162
          %s164 = smul.addr %s163, 128
          %s165 = scalar_lea.hbm %s1, %s164
          %s166 = sshll.u32 %s157, 4
          %s167 = int_to_ptr.vmem [resolvable:$true] %s166
          %172 = dma.hbm_to_vmem [thread:$0]  %s165, 1280, %s167, %s154, 512, 256, 16
        $region24: #{tpu_custom_call.1} parent=19 // pred_fallthru
          _
      $region20: #{tpu_custom_call.1} parent=5 // pred_fallthru
        _
      %p173 = scmp.le.s32.totalorder 1, %s15
      %p174 = scmp.lt.s32.totalorder %s15, 5
      %p175 = pnand %p173, %p174
      %p176 = pneg %p175
      // Predicated region
      $region25: #{tpu_custom_call.1} parent=5 // pred_check
        _
      $region26: #{tpu_custom_call.1} parent=5 // pred_check_branch
        %178 = sbr.rel (%p175) target = $region28
      $region27: #{tpu_custom_call.1} parent=5 // pred_region
        %s179 = ssub.s32 %s15, 1
        // Predicated region
        $region29: #{tpu_custom_call.1} parent=27 // pred_check
          %p180 = pneg %p60
        $region30: #{tpu_custom_call.1} parent=27 // pred_check_branch
          %182 = sbr.rel (%p180) target = $region32
        $region31: #{tpu_custom_call.1} parent=27 // pred_region
          %183 = dma.done [#allocation3], 128
        $region32: #{tpu_custom_call.1} parent=27 // pred_fallthru
          _
        %s184 = sand.u32 %s75, 1
        %s185 = scalar_lea.sflag [#allocation6], %s184
        %s186 = sand.u32 %s75, 1
        %s187 = smul.addr %s186, 80
        %s188 = scalar_lea.vmem [#allocation5], %s187
        // Predicated region
        $region33: #{tpu_custom_call.1} parent=27 // pred_check
          %p189 = pneg %p88
        $region34: #{tpu_custom_call.1} parent=27 // pred_check_branch
          %191 = sbr.rel (%p189) target = $region36
        $region35: #{tpu_custom_call.1} parent=27 // pred_region
          %192 = dma.done %s185, 1280
        $region36: #{tpu_custom_call.1} parent=27 // pred_fallthru
          _
        %p193 = pneg %p60
        %p194 = pneg %p57
        %s195 = sand.u32 %s75, 1
        %s196 = scalar_lea.sflag [#allocation6], %s195
        %s197 = sand.u32 %s75, 1
        %s198 = smul.addr %s197, 80
        %s199 = scalar_lea.vmem [#allocation5], %s198
        %p200 = pneg %p88
        %p201 = pneg %p85
        %p202 = pneg %p118
        %p203 = pneg %p115
        %s204 = sand.u32 %s105, 1
        %s205 = scalar_lea.sflag [#allocation4], %s204
        %s206 = sand.u32 %s105, 1
        %s207 = smul.addr %s206, 16
        %s208 = scalar_lea.vmem [#allocation7], %s207
        %s209 = smul.u32 2, %s27
        %s210 = smul.u32 2, %s27
        %v211 = vld [vmem:[#allocation2] sm:$0xff]
        %v212 = vld [vmem:[%s188] sm:$0xff]
        %v213 = vld [vmem:[%s188 + $0x8] sm:$0xff]
        %v214 = vld [vmem:[%s188 + $0x10] sm:$0xff]
        %v215 = vld [vmem:[%s188 + $0x18] sm:$0xff]
        %v216 = vld [vmem:[%s188 + $0x20] sm:$0xff]
        %v217 = vld [vmem:[%s188 + $0x28] sm:$0xff]
        %v218 = vld [vmem:[%s188 + $0x30] sm:$0xff]
        %v219 = vld [vmem:[%s188 + $0x38] sm:$0xff]
        %v220 = vld [vmem:[%s188 + $0x40] sm:$0xff]
        %v221 = vld [vmem:[%s188 + $0x48] sm:$0xff]
        %vm222 = vcmask 326656
        %v224 = vsel %vm222, %v211, 0
        %226 = vmatprep.subr.mxu0 %v213
        %227 = vmatpush1.msra.mxu0 %v212
        %228 = vmatprep.subr.mxu0 %v215
        %229 = vmatpush1.msra.mxu0 %v214
        %230 = vmatprep.subr.mxu0 %v217
        %231 = vmatpush1.msra.mxu0 %v216
        %232 = vmatprep.subr.mxu0 %v219
        %233 = vmatpush1.msra.mxu0 %v218
        %234 = vmatprep.subr.mxu0 %v221
        %235 = vmatpush1.msra.mxu0 %v220
        %236 = vmatprep.subr.mxu0 0.0
        %237 = vmatpush1.msra.mxu0 0.0
        %238 = vmatprep.subr.mxu0 0.0
        %239 = vmatpush1.msra.mxu0 0.0
        %240 = vmatprep.subr.mxu0 0.0
        %241 = vmatpush1.msra.mxu0 0.0
        %242 = vmatprep.subr.mxu0 0.0
        %243 = vmatpush1.msra.mxu0 0.0
        %244 = vmatprep.subr.mxu0 0.0
        %245 = vmatpush1.msra.mxu0 0.0
        %246 = vmatprep.subr.mxu0 0.0
        %247 = vmatpush1.msra.mxu0 0.0
        %248 = vmatprep.subr.mxu0 0.0
        %249 = vmatpush1.msra.mxu0 0.0
        %250 = vmatprep.subr.mxu0 0.0
        %251 = vmatpush1.msra.mxu0 0.0
        %252 = vmatprep.subr.mxu0 0.0
        %253 = vmatpush1.msra.mxu0 0.0
        %254 = vmatprep.subr.mxu0 0.0
        %255 = vmatpush1.msra.mxu0 0.0
        %256 = vmatprep.subr.mxu0 0.0
        %257 = vmatpush1.msra.mxu0 0.0
        %258 = vmatprep.subr.mxu0 0.0
        %259 = vmatpush1.msra.mxu0 0.0
        %260 = vmatprep.subr.mxu0 0.0
        %261 = vmatpush1.msra.mxu0 0.0
        %262 = vmatprep.subr.mxu0 0.0
        %263 = vmatpush1.msra.mxu0 0.0
        %264 = vmatprep.subr.mxu0 0.0
        %265 = vmatpush1.msra.mxu0 0.0
        %266 = vmatprep.subr.mxu0 0.0
        %267 = vmatpush1.msra.mxu0 0.0
        %268 = vmatprep.subr.mxu0 0.0
        %269 = vmatpush1.msra.mxu0 0.0
        %270 = vmatprep.subr.mxu0 0.0
        %271 = vmatpush1.msra.mxu0 0.0
        %272 = vmatprep.subr.mxu0 0.0
        %273 = vmatpush1.msra.mxu0 0.0
        %274 = vmatprep.subr.mxu0 0.0
        %275 = vmatpush1.msra.mxu0 0.0
        %276 = vmatprep.subr.mxu0 0.0
        %277 = vmatpush1.msra.mxu0 0.0
        %278 = vmatprep.subr.mxu0 0.0
        %279 = vmatpush1.msra.mxu0 0.0
        %280 = vmatprep.subr.mxu0 0.0
        %281 = vmatpush1.msra.mxu0 0.0
        %282 = vmatprep.subr.mxu0 0.0
        %283 = vmatpush1.msra.mxu0 0.0
        %284 = vmatprep.subr.mxu0 0.0
        %285 = vmatpush1.msra.mxu0 0.0
        %286 = vmatprep.subr.mxu0 0.0
        %287 = vmatpush1.msra.mxu0 0.0
        %288 = vmatprep.subr.mxu0 0.0
        %289 = vmatpush1.msra.mxu0 0.0
        %290 = vmatprep.mubr.f32.mxu0 0.0
        %291 = vmatmul.mubr.f32.gmra.mrb[0].mxu0 %v224
        %v292 = vpop.f32.mrb[0].mxu0
        %v293 = vadd.f32 0.0, %v292
        %v294 = vpop.f32.mrb[0].mxu0
        %v295 = vadd.f32 0.0, %v294
        %296 = vdwg.mxu0
        %297 = vst [vmem:[%s208] sm:$0xff] %v293
        %298 = vst [vmem:[%s208 + $0x8] sm:$0xff] %v295
        %s299 = sand.u32 %s105, 1
        %s300 = scalar_lea.sflag [#allocation4], %s299
        %s301 = sand.u32 %s105, 1
        %s302 = smul.addr %s301, 16
        %s303 = scalar_lea.vmem [#allocation7], %s302
        // Predicated region
        $region37: #{tpu_custom_call.1} parent=27 // pred_check
          %p304 = pneg %p115
        $region38: #{tpu_custom_call.1} parent=27 // pred_check_branch
          %306 = sbr.rel (%p304) target = $region40
        $region39: #{tpu_custom_call.1} parent=27 // pred_region
          %s307 = smul.u32 2, %s27
          %s309 = ssub.s32 256, 256
          %310 = vsyncadd %s300, %s309
          %s311 = smul.addr %s26, 4
          %s312 = sadd.s32 %s307, %s311
          %s313 = smul.addr %s25, 4
          %s314 = sadd.s32 %s312, %s313
          %s315 = smul.addr %s314, 128
          %s316 = scalar_lea.hbm %s2, %s315
          %s318 = sshll.u32 %s303, 4
          %s319 = int_to_ptr.vmem [resolvable:$true] %s318
          %321 = dma.vmem_to_hbm [thread:$0]  %s319, 256, %s316, %s300
        $region40: #{tpu_custom_call.1} parent=27 // pred_fallthru
          _
      $region28: #{tpu_custom_call.1} parent=5 // pred_fallthru
        _
      %p322 = scmp.le.s32.totalorder 2, %s15
      // Predicated region
      $region41: #{tpu_custom_call.1} parent=5 // pred_check
        %p323 = pneg %p322
      $region42: #{tpu_custom_call.1} parent=5 // pred_check_branch
        %325 = sbr.rel (%p323) target = $region44
      $region43: #{tpu_custom_call.1} parent=5 // pred_region
        %s326 = ssub.s32 %s15, 2
        // Predicated region
        $region45: #{tpu_custom_call.1} parent=43 // pred_check
          %p327 = pneg %p121
        $region46: #{tpu_custom_call.1} parent=43 // pred_check_branch
          %329 = sbr.rel (%p327) target = $region48
        $region47: #{tpu_custom_call.1} parent=43 // pred_region
          %s330 = sand.u32 %s106, 1
          %s331 = scalar_lea.sflag [#allocation4], %s330
          %s332 = sand.u32 %s106, 1
          %s333 = smul.addr %s332, 16
          %s334 = scalar_lea.vmem [#allocation7], %s333
          %335 = dma.done %s331, 256
        $region48: #{tpu_custom_call.1} parent=43 // pred_fallthru
          _
      $region44: #{tpu_custom_call.1} parent=5 // pred_fallthru
        _
    $region6: #{tpu_custom_call.1} parent=1 // loop_footer
      %s19 = sadd.s32 1, %s15
    $region7: #{tpu_custom_call.1} parent=1 // loop_footer_branch
      %14 = sbr.rel target = $region3
    $region8: #{tpu_custom_call.1} parent=1 // loop_exit
      _
    %336 = vsyncpa [#allocation3], 1
    %s337 = scalar_lea.sflag [#allocation3], 1
    %338 = vsyncpa %s337, 1
    %339 = vsyncpa [#allocation6], 1
    %s340 = scalar_lea.sflag [#allocation6], 1
    %341 = vsyncpa %s340, 1
    %342 = vsyncpa [#allocation4], 1
    %s343 = scalar_lea.sflag [#allocation4], 1
    %344 = vsyncpa %s343, 1

</llo_original>
